<compile_context>
chip_gen: v7x
topology: tpu7x:2x2x1
jax: 0.10.0
libtpu: 0.0.40
codegen_flags: <defaults>
</compile_context>

<pallas_src>
import jax
import jax.numpy as jnp
from jax.experimental import pallas as pl
from jax.experimental.pallas import tpu as pltpu


def _round_up(x, m):
    return ((x + m - 1) // m) * m


def _tpu_params():
    """Returns (per-core VMEM capacity bytes, has-2-TensorCores?) with safe fallbacks."""
    vmem_cap = 128 << 20
    try:
        vmem_cap = int(pltpu.get_tpu_info().vmem_capacity_bytes)
    except Exception:
        pass
    two_cores = False
    try:
        kind = jax.devices()[0].device_kind.lower()
        two_cores = ("v7" in kind) or ("v4" in kind)
    except Exception:
        pass
    if vmem_cap <= (64 << 20):      # 64 MiB / TC parts (v7x-class)
        two_cores = True
    return vmem_cap, two_cores


def _tb_candidates(B, V, two_cores):
    """Legal batch tiles, ordered by preference.  Legality: TB | B and the aux output
    block (TB*V, F_pad) must be sublane-aligned (TB*V % 8 == 0) or full (TB == B)."""
    cands = [tb for tb in range(1, B + 1)
             if B % tb == 0 and ((tb * V) % 8 == 0 or tb == B)]
    if two_cores:
        def key(tb):
            steps = B // tb
            if steps >= 2 and steps % 2 == 0:
                return (0, -tb)     # even step count: both TensorCores stay busy
            if steps >= 2:
                return (1, tb)      # odd: prefer more steps (smaller imbalance)
            return (2, -tb)         # single step: one core idle (last resort)
    else:
        def key(tb):
            return (0, -tb)         # single TC: fewest, biggest steps
    return sorted(cands, key=key)


def _select_tiling(B, V, G, L, F_pad, itemsize, ceiling, budget, two_cores):
    """Pick (TB, TS).  TS is a multiple of 128 and never exceeds the lane extent
    (blocks only overhang as standard trailing partial blocks); TB shrinks before TS."""
    g8 = _round_up(G, 8)
    ts_cap = L if L < 128 else (L // 128) * 128
    ts_floor = min(512, ts_cap)
    fallback = None
    for tb in _tb_candidates(B, V, two_cores):
        R = tb * V
        per_lane = 2 * R * g8 * itemsize                   # double-buffered x, per lane
        fixed = (R * g8 * 128 * 4                          # f32 accumulator
                 + 2 * R * F_pad * 4                       # aux output blocks
                 + 2 * (g8 + 8) * F_pad * 4)               # weight + bias blocks
        avail = max(min(budget, ceiling - fixed - (4 << 20)), 0)
        max_ts = avail // per_lane
        if L >= 128:
            max_ts = (max_ts // 128) * 128
        ts = max(min(ts_cap, max_ts), min(128, ts_cap))
        if ts >= ts_floor:
            return tb, ts
        if fallback is None or ts > fallback[1]:
            fallback = (tb, ts)
    return fallback


def _make_kernel(*, R, G, L, TS, LW, num_s, inv_s):
    nchunks = TS // LW
    needs_mask = (num_s * TS) > L          # only possible when num_s >= 2
    hi = jax.lax.Precision.HIGHEST
    use_loop = nchunks > 16                # keep unrolled code size bounded

    def kernel(x_ref, w_ref, b_ref, aux_ref, acc_ref):
        # x_ref:   (R, G, TS)  one spatial tile of R = TB*V rows, G sublane channels
        # w_ref:   (G, F_pad)  folded weight
        # b_ref:   (1, F_pad)
        # aux_ref: (R, F_pad)  per-view features (written only on last spatial tile)
        # acc_ref: (R, G, LW)  lane-partial f32 sums, persists across the spatial axis
        s = pl.program_id(1)
        last = num_s - 1

        @pl.when(s == 0)
        def _init():
            acc_ref[...] = jnp.zeros_like(acc_ref)

        def add_chunk(off, masked):
            chunk = x_ref[:, :, pl.ds(off, LW)].astype(jnp.float32)
            if masked:
                lane = jax.lax.broadcasted_iota(jnp.int32, (R, G, LW), 2)
                chunk = jnp.where(lane + (s * TS + off) < L, chunk, 0.0)
            acc_ref[...] += chunk          # 1 VALU add / vreg; no XLU in the hot loop

        def accumulate(masked):
            if use_loop:
                def body(j, carry):
                    add_chunk(pl.multiple_of(j * LW, LW), masked)
                    return carry
                jax.lax.fori_loop(0, nchunks, body, 0, unroll=8)
            else:
                for j in range(nchunks):
                    add_chunk(j * LW, masked)

        if needs_mask:
            @pl.when(s < last)             # N-1 of N tiles: pure load + add
            def _body():
                accumulate(False)

            @pl.when(s == last)            # only the final tile pays the tail mask
            def _tail():
                accumulate(True)
        else:
            accumulate(False)

        @pl.when(s == last)
        def _epilogue():
            gap = jnp.sum(acc_ref[...], axis=-1) * inv_s           # (R, G): the one XLU reduce
            feat = jnp.dot(gap, w_ref[...],
                           preferred_element_type=jnp.float32,
                           precision=hi) + b_ref[...]              # (R, F_pad) linear
            aux_ref[...] = feat.astype(aux_ref.dtype)

    return kernel


def view_avg_aggregate(mvimages, weight, bias, *, vmem_budget_bytes=None):
    """mvimages: (B, V, C, D, H, W) f32/bf16; weight: (C, F); bias: (F,)."""
    B, V, C, D, H, W = mvimages.shape
    S = D * H * W
    F = weight.shape[1]
    F_pad = _round_up(F, 128)
    itemsize = jnp.dtype(mvimages.dtype).itemsize

    # Fold D into the channel (sublane) axis when C alone would waste sublane padding;
    # the GAP + Linear is linear, so the grouping folds into the weight (row repeat).
    if (C % 8 != 0) and (D > 1) and (C * D <= 1024):
        G, L = C * D, H * W
        w_fold = jnp.repeat(weight.astype(jnp.float32), D, axis=0)   # (C*D, F)
    else:
        G, L = C, S
        w_fold = weight.astype(jnp.float32)

    xf = mvimages.reshape(B * V, G, L)           # free, contiguous reshape
    w_pad = jnp.zeros((G, F_pad), jnp.float32).at[:, :F].set(w_fold)
    b_pad = jnp.zeros((1, F_pad), jnp.float32).at[:, :F].set(bias.astype(jnp.float32))

    # Chip-aware VMEM policy.
    vmem_cap, two_cores = _tpu_params()
    if vmem_cap >= (128 << 20):
        ceiling = 100 << 20                      # v5e/v6e: 128 MiB parts
    else:
        ceiling = max(32 << 20, vmem_cap - (8 << 20))   # v7x: leave headroom of 64 MiB/TC
    budget = vmem_budget_bytes if vmem_budget_bytes is not None else int(ceiling * 0.45)
    budget = max(8 << 20, min(budget, int(ceiling * 0.7)))

    TB, TS = _select_tiling(B, V, G, L, F_pad, itemsize, ceiling, budget, two_cores)
    R = TB * V
    g8 = _round_up(G, 8)
    nb = B // TB
    num_s = -(-L // TS)
    LW = min(TS, 128)                            # lane width of the partial accumulator

    # Explicit VMEM accounting (all blocks + accumulator); limit is always >= requirement.
    fixed = R * g8 * 128 * 4 + 2 * R * F_pad * 4 + 2 * (g8 + 8) * F_pad * 4
    n_buf = 2
    x3 = 3 * R * g8 * TS * itemsize
    if nb * num_s >= 4 and x3 + fixed + (2 << 20) <= ceiling and x3 <= int(budget * 1.6):
        n_buf = 3                                # deeper input pipelining when it fits
    x_bytes = n_buf * R * g8 * TS * itemsize
    req = x_bytes + fixed + (2 << 20)
    vmem_limit = min(ceiling, max(req + (4 << 20), 32 << 20))
    vmem_limit = max(vmem_limit, req)

    if n_buf == 3:
        x_spec = pl.BlockSpec((R, G, TS), lambda b, s: (b, 0, s),
                              pipeline_mode=pl.Buffered(3))
    else:
        x_spec = pl.BlockSpec((R, G, TS), lambda b, s: (b, 0, s))

    kernel = _make_kernel(R=R, G=G, L=L, TS=TS, LW=LW, num_s=num_s, inv_s=1.0 / float(S))

    cost = pl.CostEstimate(
        flops=2 * B * V * G * F_pad + B * V * G * L,
        transcendentals=0,
        bytes_accessed=int(mvimages.size) * itemsize
                       + (int(w_pad.size) + int(b_pad.size)) * 4
                       + B * V * F_pad * 4,
    )

    aux_pad = pl.pallas_call(
        kernel,
        out_shape=jax.ShapeDtypeStruct((B * V, F_pad), jnp.float32),
        grid_spec=pltpu.PrefetchScalarGridSpec(
            num_scalar_prefetch=0,
            grid=(nb, num_s),                                    # spatial reduction axis last
            in_specs=[
                x_spec,
                pl.BlockSpec((G, F_pad), lambda b, s: (0, 0)),
                pl.BlockSpec((1, F_pad), lambda b, s: (0, 0)),
            ],
            out_specs=pl.BlockSpec((R, F_pad), lambda b, s: (b, 0)),
            scratch_shapes=[pltpu.VMEM((R, G, LW), jnp.float32)],
        ),
        compiler_params=pltpu.CompilerParams(
            dimension_semantics=("parallel", "arbitrary"),
            vmem_limit_bytes=int(vmem_limit),
        ),
        cost_estimate=cost,
    )(xf, w_pad, b_pad)

    aux = aux_pad[:, :F].reshape(B, V, F)
    # pooled_view = torch.mean(aux, dim=1).squeeze(); aux is tiny -> do it in XLA.
    pooled = jnp.squeeze(jnp.mean(aux, axis=1))
    return pooled, aux


if __name__ == "__main__":
    # Small deterministic shapes consistent with (B, V, C, D, H, W)
    B, V, C, D, H, W = 2, 3, 4, 2, 8, 8   # S = D*H*W = 128
    F = 32

    key = jax.random.PRNGKey(0)
    kx, kw, kb = jax.random.split(key, 3)
    mvimages = jax.random.normal(kx, (B, V, C, D, H, W), dtype=jnp.float32)
    weight = jax.random.normal(kw, (C, F), dtype=jnp.float32) * 0.1
    bias = jax.random.normal(kb, (F,), dtype=jnp.float32) * 0.01

    pooled, aux = view_avg_aggregate(mvimages, weight, bias)
    jax.block_until_ready((pooled, aux))

    # Pure-JAX reference
    x_gap = mvimages.reshape(B * V, C, -1).mean(axis=-1)                        # (B*V, C)
    feat_want = jnp.dot(x_gap, weight, precision=jax.lax.Precision.HIGHEST) + bias
    aux_want = feat_want.reshape(B, V, F)
    pooled_want = jnp.squeeze(aux_want.mean(axis=1))

    assert aux.shape == (B, V, F)
    assert pooled.shape == (B, F)
    assert jnp.allclose(aux, aux_want, atol=1e-5, rtol=1e-5), \
        float(jnp.max(jnp.abs(aux - aux_want)))
    assert jnp.allclose(pooled, pooled_want, atol=1e-5, rtol=1e-5), \
        float(jnp.max(jnp.abs(pooled - pooled_want)))

    print("KERNEL_OK")
</pallas_src>

<mosaic_0001>
module attributes {stable_mosaic.version = 11 : i64} {
  func.func @kernel(%arg0: i32, %arg1: i32, %arg2: memref<6x8x64xf32, #tpu.memory_space<vmem>>, %arg3: memref<8x128xf32, #tpu.memory_space<vmem>>, %arg4: memref<1x128xf32, #tpu.memory_space<vmem>>, %arg5: memref<6x128xf32, #tpu.memory_space<vmem>>, %arg6: memref<6x8x64xf32, #tpu.memory_space<vmem>>) attributes {dimension_semantics = [#tpu.dimension_semantics<parallel>, #tpu.dimension_semantics<arbitrary>], iteration_bounds = array<i64: 1, 1>, scalar_prefetch = 0 : i64, scratch_operands = 1 : i64, tpu.core_type = #tpu.core_type<tc>, window_params = [{transform_indices = @transform_0, window_bounds = array<i64: 6, 8, 64>}, {pipeline_mode = #tpu.pipeline_mode<synchronous>, transform_indices = @transform_1, window_bounds = array<i64: 8, 128>}, {pipeline_mode = #tpu.pipeline_mode<synchronous>, transform_indices = @transform_2, window_bounds = array<i64: 1, 128>}, {transform_indices = @transform_3, window_bounds = array<i64: 6, 128>}]} {
    %c0_i32 = arith.constant 0 : i32
    %0 = arith.cmpi eq, %arg1, %c0_i32 : i32
    %1 = arith.extui %0 : i1 to i32
    %c0_i32_0 = arith.constant 0 : i32
    %2 = arith.cmpi ne, %1, %c0_i32_0 : i32
    scf.if %2 {
      %cst = arith.constant 0.000000e+00 : f32
      %10 = vector.broadcast %cst : f32 to vector<6x8x64xf32>
      %c0_11 = arith.constant 0 : index
      %c0_12 = arith.constant 0 : index
      %c0_13 = arith.constant 0 : index
      %11 = vector.load %arg6[%c0_11, %c0_12, %c0_13] : memref<6x8x64xf32, #tpu.memory_space<vmem>>, vector<6x8x64xf32>
      tpu.vector_store %arg6[%c0_11, %c0_12, %c0_13], %10 {strides = array<i32>} : memref<6x8x64xf32, #tpu.memory_space<vmem>>, vector<6x8x64xf32>,
    } else {
    }
    %c0 = arith.constant 0 : index
    %c0_1 = arith.constant 0 : index
    %c0_2 = arith.constant 0 : index
    %3 = vector.load %arg2[%c0, %c0_1, %c0_2] : memref<6x8x64xf32, #tpu.memory_space<vmem>>, vector<6x8x64xf32>
    %c0_3 = arith.constant 0 : index
    %c0_4 = arith.constant 0 : index
    %c0_5 = arith.constant 0 : index
    %4 = vector.load %arg6[%c0_3, %c0_4, %c0_5] : memref<6x8x64xf32, #tpu.memory_space<vmem>>, vector<6x8x64xf32>
    %5 = arith.addf %4, %3 : vector<6x8x64xf32>
    %c0_6 = arith.constant 0 : index
    %c0_7 = arith.constant 0 : index
    %c0_8 = arith.constant 0 : index
    %6 = vector.load %arg6[%c0_6, %c0_7, %c0_8] : memref<6x8x64xf32, #tpu.memory_space<vmem>>, vector<6x8x64xf32>
    tpu.vector_store %arg6[%c0_6, %c0_7, %c0_8], %5 {strides = array<i32>} : memref<6x8x64xf32, #tpu.memory_space<vmem>>, vector<6x8x64xf32>,
    %c0_i32_9 = arith.constant 0 : i32
    %7 = arith.cmpi eq, %arg1, %c0_i32_9 : i32
    %8 = arith.extui %7 : i1 to i32
    %c0_i32_10 = arith.constant 0 : i32
    %9 = arith.cmpi ne, %8, %c0_i32_10 : i32
    scf.if %9 {
      %c0_11 = arith.constant 0 : index
      %c0_12 = arith.constant 0 : index
      %c0_13 = arith.constant 0 : index
      %10 = vector.load %arg6[%c0_11, %c0_12, %c0_13] : memref<6x8x64xf32, #tpu.memory_space<vmem>>, vector<6x8x64xf32>
      %cst = arith.constant dense<0.000000e+00> : vector<6x8xf32>
      %11 = vector.multi_reduction <add>, %10, %cst [2] : vector<6x8x64xf32> to vector<6x8xf32>
      %cst_14 = arith.constant 7.812500e-03 : f32
      %12 = vector.broadcast %cst_14 : f32 to vector<6x8xf32>
      %13 = arith.mulf %11, %12 : vector<6x8xf32>
      %c0_15 = arith.constant 0 : index
      %c0_16 = arith.constant 0 : index
      %14 = vector.load %arg3[%c0_15, %c0_16] : memref<8x128xf32, #tpu.memory_space<vmem>>, vector<8x128xf32>
      %cst_17 = arith.constant dense<0.000000e+00> : vector<6x128xf32>
      %15 = tpu.matmul %13, %14, %cst_17 {dimension_numbers = #tpu.dot_dimension_numbers<[1], [0], [0], [1], [0, 0, 1, 1], [], []>, precision = #tpu.contract_precision<fp32>} : vector<6x8xf32>, vector<8x128xf32>, vector<6x128xf32> -> vector<6x128xf32>
      %c0_18 = arith.constant 0 : index
      %c0_19 = arith.constant 0 : index
      %16 = vector.load %arg4[%c0_18, %c0_19] : memref<1x128xf32, #tpu.memory_space<vmem>>, vector<1x128xf32>
      %17 = vector.broadcast %16 : vector<1x128xf32> to vector<6x128xf32>
      %18 = arith.addf %15, %17 : vector<6x128xf32>
      %c0_20 = arith.constant 0 : index
      %c0_21 = arith.constant 0 : index
      %19 = vector.load %arg5[%c0_20, %c0_21] : memref<6x128xf32, #tpu.memory_space<vmem>>, vector<6x128xf32>
      tpu.vector_store %arg5[%c0_20, %c0_21], %18 {strides = array<i32>} : memref<6x128xf32, #tpu.memory_space<vmem>>, vector<6x128xf32>,
    } else {
    }
    return
  }
  func.func @transform_0(%arg0: i32, %arg1: i32) -> (i32, i32, i32) {
    %c0_i32 = arith.constant 0 : i32
    %c0_i32_0 = arith.constant 0 : i32
    return %arg0, %c0_i32, %arg1 : i32, i32, i32
  }
  func.func @transform_1(%arg0: i32, %arg1: i32) -> (i32, i32) {
    %c0_i32 = arith.constant 0 : i32
    %c0_i32_0 = arith.constant 0 : i32
    %c0_i32_1 = arith.constant 0 : i32
    return %c0_i32, %c0_i32_0 : i32, i32
  }
  func.func @transform_2(%arg0: i32, %arg1: i32) -> (i32, i32) {
    %c0_i32 = arith.constant 0 : i32
    %c0_i32_0 = arith.constant 0 : i32
    %c0_i32_1 = arith.constant 0 : i32
    return %c0_i32, %c0_i32_0 : i32, i32
  }
  func.func @transform_3(%arg0: i32, %arg1: i32) -> (i32, i32) {
    %c0_i32 = arith.constant 0 : i32
    %c0_i32_0 = arith.constant 0 : i32
    return %arg0, %c0_i32 : i32, i32
  }
}

</mosaic_0001>

<llo_original>
// kernel: tpu_custom_call.1
$region0: #{tpu_custom_call.1}
  #allocation0 [shape = 'u32[]', space=smem, size = 0x4, offset = 0x4, fixed_abs, tag = 'smem constant byte address 0x4 - core index']
  #allocation1 [shape = 'u32[144,128]{1,0:T(1,128)}', space=vmem, size = 0x12000, scoped, tag = 'internal scratch']
  #allocation2 [shape = 'f32[6,8,64]{2,1,0:T(8,128)}', space=vmem, size = 0x6000, scoped, tag = 'scratch operand']
  %s0 = inlined_call_operand.hbm [shape: f32[6,8,64], index: 0, kind: input, shape index: {}]
  %s1 = inlined_call_operand.hbm [shape: f32[8,128], index: 1, kind: input, shape index: {}]
  %s2 = inlined_call_operand.vmem [shape: f32[1,128], index: 2, kind: input, shape index: {}]
  %s3 = inlined_call_operand.hbm [shape: f32[6,128], index: 3, kind: output, shape index: {}]
  %s4 = sld [smem:[#allocation0]]
  $region38: #{tpu_custom_call.1} parent=0
    _
  %s6 = ssub.s32 1, %s4
  %s7 = scalar_select 0, %s6, %s4
  $region1: #{tpu_custom_call.1} parent=0
    #allocation3 [shape = 'u8[24576]{0}', space=vmem, size = 0x6000, scoped, tag = 'input window, operand 0, single buffered']
    #allocation4 [shape = 's32[1]{0}', space=sflag, size = 0x4, scoped, tag = 'scoped memory for tpu_custom_call.1']
    #allocation5 [shape = 's32[1]{0}', space=sflag, size = 0x4, scoped, tag = 'scoped memory for tpu_custom_call.1']
    #allocation6 [shape = 'u8[4096]{0}', space=vmem, size = 0x1000, scoped, tag = 'input window, operand 1, single buffered']
    #allocation7 [shape = 's32[1]{0}', space=sflag, size = 0x4, scoped, tag = 'scoped memory for tpu_custom_call.1']
    #allocation8 [shape = 'u8[4096]{0}', space=vmem, size = 0x1000, scoped, tag = 'output window, operand 0, single buffered']
    %8 = vsyncpa [#allocation4], 0
    %9 = vsyncpa [#allocation7], 0
    %10 = vsyncpa [#allocation5], 0
    // Predicated region
    $region2: #{tpu_custom_call.1} parent=1 // pred_check
      _
    $region3: #{tpu_custom_call.1} parent=1 // pred_check_branch
      %12 = sbr.rel (0) target = $region5
    $region4: #{tpu_custom_call.1} parent=1 // pred_region
      %s14 = ssub.s32 768, 768
      %15 = vsyncadd [#allocation4], %s14
      %s16 = sshll.u32 [#allocation3], 4
      %s17 = int_to_ptr.vmem [resolvable:$true] %s16
      %22 = dma.hbm_to_vmem [thread:$0]  %s0, 768, %s17, [#allocation4], 128, 128, 8
    $region5: #{tpu_custom_call.1} parent=1 // pred_fallthru
      _
    // Predicated region
    $region6: #{tpu_custom_call.1} parent=1 // pred_check
      _
    $region7: #{tpu_custom_call.1} parent=1 // pred_check_branch
      %24 = sbr.rel (0) target = $region9
    $region8: #{tpu_custom_call.1} parent=1 // pred_region
      %s26 = ssub.s32 128, 128
      %27 = vsyncadd [#allocation7], %s26
      %s29 = sshll.u32 [#allocation6], 4
      %s30 = int_to_ptr.vmem [resolvable:$true] %s29
      %32 = dma.hbm_to_vmem [thread:$0]  %s1, 128, %s30, [#allocation7]
    $region9: #{tpu_custom_call.1} parent=1 // pred_fallthru
      _
    // Predicated region
    $region10: #{tpu_custom_call.1} parent=1 // pred_check
      _
    $region11: #{tpu_custom_call.1} parent=1 // pred_check_branch
      %34 = sbr.rel (0) target = $region13
    $region12: #{tpu_custom_call.1} parent=1 // pred_region
      _
    $region13: #{tpu_custom_call.1} parent=1 // pred_fallthru
      _
    // Predicated region
    $region14: #{tpu_custom_call.1} parent=1 // pred_check
      _
    $region15: #{tpu_custom_call.1} parent=1 // pred_check_branch
      %36 = sbr.rel (0) target = $region17
    $region16: #{tpu_custom_call.1} parent=1 // pred_region
      %37 = dma.done [#allocation4], 768
    $region17: #{tpu_custom_call.1} parent=1 // pred_fallthru
      _
    // Predicated region
    $region18: #{tpu_custom_call.1} parent=1 // pred_check
      _
    $region19: #{tpu_custom_call.1} parent=1 // pred_check_branch
      %39 = sbr.rel (0) target = $region21
    $region20: #{tpu_custom_call.1} parent=1 // pred_region
      %40 = dma.done [#allocation7], 128
    $region21: #{tpu_custom_call.1} parent=1 // pred_fallthru
      _
    %p41 = scmp.eq.s32.totalorder 0, 0
    // Predicated region
    $region22: #{tpu_custom_call.1} parent=1 // pred_check
      %p42 = pneg %p41
    $region23: #{tpu_custom_call.1} parent=1 // pred_check_branch
      %44 = sbr.rel (%p42) target = $region25
    $region24: #{tpu_custom_call.1} parent=1 // pred_region
      %vm45 = vcmask 523264
      %46 = vst.msk [vmem:[#allocation2] sm:$0xff] %vm45, 0.0
      %47 = vst.msk [vmem:[#allocation2 + $0x8] sm:$0xff] %vm45, 0.0
      %48 = vst.msk [vmem:[#allocation2 + $0x10] sm:$0xff] %vm45, 0.0
      %49 = vst.msk [vmem:[#allocation2 + $0x18] sm:$0xff] %vm45, 0.0
      %50 = vst.msk [vmem:[#allocation2 + $0x20] sm:$0xff] %vm45, 0.0
      %51 = vst.msk [vmem:[#allocation2 + $0x28] sm:$0xff] %vm45, 0.0
    $region25: #{tpu_custom_call.1} parent=1 // pred_fallthru
      _
    %v52 = vld [vmem:[#allocation3] sm:$0xff]
    %v53 = vld [vmem:[#allocation3 + $0x8] sm:$0xff]
    %v54 = vld [vmem:[#allocation3 + $0x10] sm:$0xff]
    %v55 = vld [vmem:[#allocation3 + $0x18] sm:$0xff]
    %v56 = vld [vmem:[#allocation3 + $0x20] sm:$0xff]
    %v57 = vld [vmem:[#allocation3 + $0x28] sm:$0xff]
    %v58 = vld [vmem:[#allocation2] sm:$0xff]
    %v59 = vld [vmem:[#allocation2 + $0x8] sm:$0xff]
    %v60 = vld [vmem:[#allocation2 + $0x10] sm:$0xff]
    %v61 = vld [vmem:[#allocation2 + $0x18] sm:$0xff]
    %v62 = vld [vmem:[#allocation2 + $0x20] sm:$0xff]
    %v63 = vld [vmem:[#allocation2 + $0x28] sm:$0xff]
    %v64 = vadd.f32 %v58, %v52
    %v65 = vadd.f32 %v59, %v53
    %v66 = vadd.f32 %v60, %v54
    %v67 = vadd.f32 %v61, %v55
    %v68 = vadd.f32 %v62, %v56
    %v69 = vadd.f32 %v63, %v57
    %vm70 = vcmask 523264
    %71 = vst.msk [vmem:[#allocation2] sm:$0xff] %vm70, %v64
    %72 = vst.msk [vmem:[#allocation2 + $0x8] sm:$0xff] %vm70, %v65
    %73 = vst.msk [vmem:[#allocation2 + $0x10] sm:$0xff] %vm70, %v66
    %74 = vst.msk [vmem:[#allocation2 + $0x18] sm:$0xff] %vm70, %v67
    %75 = vst.msk [vmem:[#allocation2 + $0x20] sm:$0xff] %vm70, %v68
    %76 = vst.msk [vmem:[#allocation2 + $0x28] sm:$0xff] %vm70, %v69
    // Predicated region
    $region26: #{tpu_custom_call.1} parent=1 // pred_check
      %p77 = pneg %p41
    $region27: #{tpu_custom_call.1} parent=1 // pred_check_branch
      %79 = sbr.rel (%p77) target = $region29
    $region28: #{tpu_custom_call.1} parent=1 // pred_region
      %v80 = vld [vmem:[#allocation2] sm:$0xff]
      %v81 = vld [vmem:[#allocation2 + $0x8] sm:$0xff]
      %v82 = vld [vmem:[#allocation2 + $0x10] sm:$0xff]
      %v83 = vld [vmem:[#allocation2 + $0x18] sm:$0xff]
      %v84 = vld [vmem:[#allocation2 + $0x20] sm:$0xff]
      %v85 = vld [vmem:[#allocation2 + $0x28] sm:$0xff]
      %v86 = vsel %vm70, %v80, 0.0
      %87 = vadd.xlane.f32.xlu0 %v86
      %v88 = vpop.xlane.xlu0 %87
      %v89 = vsel %vm70, %v81, 0.0
      %90 = vadd.xlane.f32.xlu0 %v89
      %v91 = vpop.xlane.xlu0 %90
      %v92 = vsel %vm70, %v82, 0.0
      %93 = vadd.xlane.f32.xlu0 %v92
      %v94 = vpop.xlane.xlu0 %93
      %v95 = vsel %vm70, %v83, 0.0
      %96 = vadd.xlane.f32.xlu0 %v95
      %v97 = vpop.xlane.xlu0 %96
      %v98 = vsel %vm70, %v84, 0.0
      %99 = vadd.xlane.f32.xlu0 %v98
      %v100 = vpop.xlane.xlu0 %99
      %v101 = vsel %vm70, %v85, 0.0
      %102 = vadd.xlane.f32.xlu0 %v101
      %v103 = vpop.xlane.xlu0 %102
      %v104 = vmul.f32 %v88, 0.0078125
      %v105 = vmul.f32 %v91, 0.0078125
      %v106 = vmul.f32 %v94, 0.0078125
      %v107 = vmul.f32 %v97, 0.0078125
      %v108 = vmul.f32 %v100, 0.0078125
      %v109 = vmul.f32 %v103, 0.0078125
      %v110 = vld [vmem:[#allocation6] sm:$0xff]
      %v111 = vld [vmem:[%s2] sm:$0x1]
      %v113 = vlaneseq
      %v114 = vshrl.u32 %v113, 7
      %v115 = vsub.s32 0, %v114
      %v116 = vrot.slane %v111, %v115
      %v124 = vlaneseq
      %v125 = vand.u32 %v124, 127
      %v126 = vlaneseq
      %v127 = vshrl.u32 %v126, 7
      %v128 = vsub.s32 %v125, %v127
      %v129 = vrot.slane %v104, %v128
      %v130 = vlaneseq
      %v131 = vshrl.u32 %v130, 7
      %v132 = vsub.s32 %v125, %v131
      %v133 = vrot.slane %v105, %v132
      %v134 = vlaneseq
      %v135 = vshrl.u32 %v134, 7
      %v136 = vsub.s32 %v125, %v135
      %v137 = vrot.slane %v106, %v136
      %v138 = vlaneseq
      %v139 = vshrl.u32 %v138, 7
      %v140 = vsub.s32 %v125, %v139
      %v141 = vrot.slane %v107, %v140
      %v142 = vlaneseq
      %v143 = vshrl.u32 %v142, 7
      %v144 = vsub.s32 %v125, %v143
      %v145 = vrot.slane %v108, %v144
      %v146 = vlaneseq
      %v147 = vshrl.u32 %v146, 7
      %v148 = vsub.s32 %v125, %v147
      %v149 = vrot.slane %v109, %v148
      %vm150 = vcmask 1041409
      %v151 = vsel %vm150, %v133, %v129
      %vm152 = vcmask 1042434
      %v153 = vsel %vm152, %v137, %v151
      %vm154 = vcmask 1043459
      %v155 = vsel %vm154, %v141, %v153
      %vm156 = vcmask 1044484
      %v157 = vsel %vm156, %v145, %v155
      %vm158 = vcmask 1045509
      %v159 = vsel %vm158, %v149, %v157
      %vm160 = vcmask 64512
      %v161 = vsel %vm160, %v159, 0
      %163 = vmatprep.subr.mxu0 0.0
      %v164 = vand.u32 %v110, 4294901760
      %165 = vmatpush1.msra.mxu0 %v164
      %166 = vmatprep.subr.mxu0 0.0
      %167 = vmatpush1.msra.mxu0 0.0
      %168 = vmatprep.subr.mxu0 0.0
      %169 = vmatpush1.msra.mxu0 0.0
      %170 = vmatprep.subr.mxu0 0.0
      %171 = vmatpush1.msra.mxu0 0.0
      %172 = vmatprep.subr.mxu0 0.0
      %173 = vmatpush1.msra.mxu0 0.0
      %174 = vmatprep.subr.mxu0 0.0
      %175 = vmatpush1.msra.mxu0 0.0
      %176 = vmatprep.subr.mxu0 0.0
      %177 = vmatpush1.msra.mxu0 0.0
      %178 = vmatprep.subr.mxu0 0.0
      %179 = vmatpush1.msra.mxu0 0.0
      %180 = vmatprep.subr.mxu0 0.0
      %181 = vmatpush1.msra.mxu0 0.0
      %182 = vmatprep.subr.mxu0 0.0
      %183 = vmatpush1.msra.mxu0 0.0
      %184 = vmatprep.subr.mxu0 0.0
      %185 = vmatpush1.msra.mxu0 0.0
      %186 = vmatprep.subr.mxu0 0.0
      %187 = vmatpush1.msra.mxu0 0.0
      %188 = vmatprep.subr.mxu0 0.0
      %189 = vmatpush1.msra.mxu0 0.0
      %190 = vmatprep.subr.mxu0 0.0
      %191 = vmatpush1.msra.mxu0 0.0
      %192 = vmatprep.subr.mxu0 0.0
      %193 = vmatpush1.msra.mxu0 0.0
      %194 = vmatprep.subr.mxu0 0.0
      %195 = vmatpush1.msra.mxu0 0.0
      %196 = vmatprep.subr.mxu0 0.0
      %197 = vmatpush1.msra.mxu0 0.0
      %198 = vmatprep.subr.mxu0 0.0
      %199 = vmatpush1.msra.mxu0 0.0
      %200 = vmatprep.subr.mxu0 0.0
      %201 = vmatpush1.msra.mxu0 0.0
      %202 = vmatprep.subr.mxu0 0.0
      %203 = vmatpush1.msra.mxu0 0.0
      %204 = vmatprep.subr.mxu0 0.0
      %205 = vmatpush1.msra.mxu0 0.0
      %206 = vmatprep.subr.mxu0 0.0
      %207 = vmatpush1.msra.mxu0 0.0
      %208 = vmatprep.subr.mxu0 0.0
      %209 = vmatpush1.msra.mxu0 0.0
      %210 = vmatprep.subr.mxu0 0.0
      %211 = vmatpush1.msra.mxu0 0.0
      %212 = vmatprep.subr.mxu0 0.0
      %213 = vmatpush1.msra.mxu0 0.0
      %214 = vmatprep.subr.mxu0 0.0
      %215 = vmatpush1.msra.mxu0 0.0
      %216 = vmatprep.subr.mxu0 0.0
      %217 = vmatpush1.msra.mxu0 0.0
      %218 = vmatprep.subr.mxu0 0.0
      %219 = vmatpush1.msra.mxu0 0.0
      %220 = vmatprep.subr.mxu0 0.0
      %221 = vmatpush1.msra.mxu0 0.0
      %222 = vmatprep.subr.mxu0 0.0
      %223 = vmatpush1.msra.mxu0 0.0
      %224 = vmatprep.subr.mxu0 0.0
      %225 = vmatpush1.msra.mxu0 0.0
      %226 = vmatprep.subr.mxu0 0.0
      %227 = vmatpush1.msra.mxu0 0.0
      %228 = vmatprep.mubr.f32.mxu0 0.0
      %v229 = vand.u32 %v161, 4294901760
      %v230 = vsub.f32 %v161, %v229
      %v231 = vand.u32 %v230, 4294901760
      %v232 = vsub.f32 %v230, %v231
      %v233 = vand.u32 %v232, 4294901760
      %234 = vmatmul.mubr.f32.gmra.mrb[0].mxu0 %v233
      %v235 = vpop.f32.mrb[0].mxu0
      %v236 = vadd.f32 %v116, %v235
      %v237 = vpop.f32.mrb[0].mxu0
      %238 = vdwg.mxu0
      %239 = vmatprep.subr.mxu0 0.0
      %v240 = vand.u32 %v110, 4294901760
      %v241 = vsub.f32 %v110, %v240
      %v242 = vand.u32 %v241, 4294901760
      %v243 = vsub.f32 %v241, %v242
      %v244 = vand.u32 %v243, 4294901760
      %245 = vmatpush1.msra.mxu0 %v244
      %246 = vmatprep.subr.mxu0 0.0
      %247 = vmatpush1.msra.mxu0 0.0
      %248 = vmatprep.subr.mxu0 0.0
      %249 = vmatpush1.msra.mxu0 0.0
      %250 = vmatprep.subr.mxu0 0.0
      %251 = vmatpush1.msra.mxu0 0.0
      %252 = vmatprep.subr.mxu0 0.0
      %253 = vmatpush1.msra.mxu0 0.0
      %254 = vmatprep.subr.mxu0 0.0
      %255 = vmatpush1.msra.mxu0 0.0
      %256 = vmatprep.subr.mxu0 0.0
      %257 = vmatpush1.msra.mxu0 0.0
      %258 = vmatprep.subr.mxu0 0.0
      %259 = vmatpush1.msra.mxu0 0.0
      %260 = vmatprep.subr.mxu0 0.0
      %261 = vmatpush1.msra.mxu0 0.0
      %262 = vmatprep.subr.mxu0 0.0
      %263 = vmatpush1.msra.mxu0 0.0
      %264 = vmatprep.subr.mxu0 0.0
      %265 = vmatpush1.msra.mxu0 0.0
      %266 = vmatprep.subr.mxu0 0.0
      %267 = vmatpush1.msra.mxu0 0.0
      %268 = vmatprep.subr.mxu0 0.0
      %269 = vmatpush1.msra.mxu0 0.0
      %270 = vmatprep.subr.mxu0 0.0
      %271 = vmatpush1.msra.mxu0 0.0
      %272 = vmatprep.subr.mxu0 0.0
      %273 = vmatpush1.msra.mxu0 0.0
      %274 = vmatprep.subr.mxu0 0.0
      %275 = vmatpush1.msra.mxu0 0.0
      %276 = vmatprep.subr.mxu0 0.0
      %277 = vmatpush1.msra.mxu0 0.0
      %278 = vmatprep.subr.mxu0 0.0
      %279 = vmatpush1.msra.mxu0 0.0
      %280 = vmatprep.subr.mxu0 0.0
      %281 = vmatpush1.msra.mxu0 0.0
      %282 = vmatprep.subr.mxu0 0.0
      %283 = vmatpush1.msra.mxu0 0.0
      %284 = vmatprep.subr.mxu0 0.0
      %285 = vmatpush1.msra.mxu0 0.0
      %286 = vmatprep.subr.mxu0 0.0
      %287 = vmatpush1.msra.mxu0 0.0
      %288 = vmatprep.subr.mxu0 0.0
      %289 = vmatpush1.msra.mxu0 0.0
      %290 = vmatprep.subr.mxu0 0.0
      %291 = vmatpush1.msra.mxu0 0.0
      %292 = vmatprep.subr.mxu0 0.0
      %293 = vmatpush1.msra.mxu0 0.0
      %294 = vmatprep.subr.mxu0 0.0
      %295 = vmatpush1.msra.mxu0 0.0
      %296 = vmatprep.subr.mxu0 0.0
      %297 = vmatpush1.msra.mxu0 0.0
      %298 = vmatprep.subr.mxu0 0.0
      %299 = vmatpush1.msra.mxu0 0.0
      %300 = vmatprep.subr.mxu0 0.0
      %301 = vmatpush1.msra.mxu0 0.0
      %302 = vmatprep.subr.mxu0 0.0
      %303 = vmatpush1.msra.mxu0 0.0
      %304 = vmatprep.subr.mxu0 0.0
      %305 = vmatpush1.msra.mxu0 0.0
      %306 = vmatprep.subr.mxu0 0.0
      %307 = vmatpush1.msra.mxu0 0.0
      %308 = vmatprep.mubr.f32.mxu0 0.0
      %v309 = vand.u32 %v161, 4294901760
      %310 = vmatmul.mubr.f32.gmra.mrb[0].mxu0 %v309
      %v311 = vpop.f32.mrb[0].mxu0
      %v312 = vadd.f32 %v236, %v311
      %v313 = vpop.f32.mrb[0].mxu0
      %314 = vdwg.mxu0
      %315 = vmatprep.subr.mxu0 0.0
      %v316 = vand.u32 %v110, 4294901760
      %v317 = vsub.f32 %v110, %v316
      %318 = vmatpush1.msra.mxu0 %v317
      %319 = vmatprep.subr.mxu0 0.0
      %320 = vmatpush1.msra.mxu0 0.0
      %321 = vmatprep.subr.mxu0 0.0
      %322 = vmatpush1.msra.mxu0 0.0
      %323 = vmatprep.subr.mxu0 0.0
      %324 = vmatpush1.msra.mxu0 0.0
      %325 = vmatprep.subr.mxu0 0.0
      %326 = vmatpush1.msra.mxu0 0.0
      %327 = vmatprep.subr.mxu0 0.0
      %328 = vmatpush1.msra.mxu0 0.0
      %329 = vmatprep.subr.mxu0 0.0
      %330 = vmatpush1.msra.mxu0 0.0
      %331 = vmatprep.subr.mxu0 0.0
      %332 = vmatpush1.msra.mxu0 0.0
      %333 = vmatprep.subr.mxu0 0.0
      %334 = vmatpush1.msra.mxu0 0.0
      %335 = vmatprep.subr.mxu0 0.0
      %336 = vmatpush1.msra.mxu0 0.0
      %337 = vmatprep.subr.mxu0 0.0
      %338 = vmatpush1.msra.mxu0 0.0
      %339 = vmatprep.subr.mxu0 0.0
      %340 = vmatpush1.msra.mxu0 0.0
      %341 = vmatprep.subr.mxu0 0.0
      %342 = vmatpush1.msra.mxu0 0.0
      %343 = vmatprep.subr.mxu0 0.0
      %344 = vmatpush1.msra.mxu0 0.0
      %345 = vmatprep.subr.mxu0 0.0
      %346 = vmatpush1.msra.mxu0 0.0
      %347 = vmatprep.subr.mxu0 0.0
      %348 = vmatpush1.msra.mxu0 0.0
      %349 = vmatprep.subr.mxu0 0.0
      %350 = vmatpush1.msra.mxu0 0.0
      %351 = vmatprep.subr.mxu0 0.0
      %352 = vmatpush1.msra.mxu0 0.0
      %353 = vmatprep.subr.mxu0 0.0
      %354 = vmatpush1.msra.mxu0 0.0
      %355 = vmatprep.subr.mxu0 0.0
      %356 = vmatpush1.msra.mxu0 0.0
      %357 = vmatprep.subr.mxu0 0.0
      %358 = vmatpush1.msra.mxu0 0.0
      %359 = vmatprep.subr.mxu0 0.0
      %360 = vmatpush1.msra.mxu0 0.0
      %361 = vmatprep.subr.mxu0 0.0
      %362 = vmatpush1.msra.mxu0 0.0
      %363 = vmatprep.subr.mxu0 0.0
      %364 = vmatpush1.msra.mxu0 0.0
      %365 = vmatprep.subr.mxu0 0.0
      %366 = vmatpush1.msra.mxu0 0.0
      %367 = vmatprep.subr.mxu0 0.0
      %368 = vmatpush1.msra.mxu0 0.0
      %369 = vmatprep.subr.mxu0 0.0
      %370 = vmatpush1.msra.mxu0 0.0
      %371 = vmatprep.subr.mxu0 0.0
      %372 = vmatpush1.msra.mxu0 0.0
      %373 = vmatprep.subr.mxu0 0.0
      %374 = vmatpush1.msra.mxu0 0.0
      %375 = vmatprep.subr.mxu0 0.0
      %376 = vmatpush1.msra.mxu0 0.0
      %377 = vmatprep.subr.mxu0 0.0
      %378 = vmatpush1.msra.mxu0 0.0
      %379 = vmatprep.subr.mxu0 0.0
      %380 = vmatpush1.msra.mxu0 0.0
      %381 = vmatprep.mubr.f32.mxu0 0.0
      %v382 = vand.u32 %v161, 4294901760
      %v383 = vsub.f32 %v161, %v382
      %384 = vmatmul.mubr.f32.gmra.mrb[0].mxu0 %v383
      %v385 = vpop.f32.mrb[0].mxu0
      %v386 = vadd.f32 %v312, %v385
      %v387 = vpop.f32.mrb[0].mxu0
      %388 = vdwg.mxu0
      %389 = vmatprep.subr.mxu0 0.0
      %v390 = vand.u32 %v110, 4294901760
      %391 = vmatpush1.msra.mxu0 %v390
      %392 = vmatprep.subr.mxu0 0.0
      %393 = vmatpush1.msra.mxu0 0.0
      %394 = vmatprep.subr.mxu0 0.0
      %395 = vmatpush1.msra.mxu0 0.0
      %396 = vmatprep.subr.mxu0 0.0
      %397 = vmatpush1.msra.mxu0 0.0
      %398 = vmatprep.subr.mxu0 0.0
      %399 = vmatpush1.msra.mxu0 0.0
      %400 = vmatprep.subr.mxu0 0.0
      %401 = vmatpush1.msra.mxu0 0.0
      %402 = vmatprep.subr.mxu0 0.0
      %403 = vmatpush1.msra.mxu0 0.0
      %404 = vmatprep.subr.mxu0 0.0
      %405 = vmatpush1.msra.mxu0 0.0
      %406 = vmatprep.subr.mxu0 0.0
      %407 = vmatpush1.msra.mxu0 0.0
      %408 = vmatprep.subr.mxu0 0.0
      %409 = vmatpush1.msra.mxu0 0.0
      %410 = vmatprep.subr.mxu0 0.0
      %411 = vmatpush1.msra.mxu0 0.0
      %412 = vmatprep.subr.mxu0 0.0
      %413 = vmatpush1.msra.mxu0 0.0
      %414 = vmatprep.subr.mxu0 0.0
      %415 = vmatpush1.msra.mxu0 0.0
      %416 = vmatprep.subr.mxu0 0.0
      %417 = vmatpush1.msra.mxu0 0.0
      %418 = vmatprep.subr.mxu0 0.0
      %419 = vmatpush1.msra.mxu0 0.0
      %420 = vmatprep.subr.mxu0 0.0
      %421 = vmatpush1.msra.mxu0 0.0
      %422 = vmatprep.subr.mxu0 0.0
      %423 = vmatpush1.msra.mxu0 0.0
      %424 = vmatprep.subr.mxu0 0.0
      %425 = vmatpush1.msra.mxu0 0.0
      %426 = vmatprep.subr.mxu0 0.0
      %427 = vmatpush1.msra.mxu0 0.0
      %428 = vmatprep.subr.mxu0 0.0
      %429 = vmatpush1.msra.mxu0 0.0
      %430 = vmatprep.subr.mxu0 0.0
      %431 = vmatpush1.msra.mxu0 0.0
      %432 = vmatprep.subr.mxu0 0.0
      %433 = vmatpush1.msra.mxu0 0.0
      %434 = vmatprep.subr.mxu0 0.0
      %435 = vmatpush1.msra.mxu0 0.0
      %436 = vmatprep.subr.mxu0 0.0
      %437 = vmatpush1.msra.mxu0 0.0
      %438 = vmatprep.subr.mxu0 0.0
      %439 = vmatpush1.msra.mxu0 0.0
      %440 = vmatprep.subr.mxu0 0.0
      %441 = vmatpush1.msra.mxu0 0.0
      %442 = vmatprep.subr.mxu0 0.0
      %443 = vmatpush1.msra.mxu0 0.0
      %444 = vmatprep.subr.mxu0 0.0
      %445 = vmatpush1.msra.mxu0 0.0
      %446 = vmatprep.subr.mxu0 0.0
      %447 = vmatpush1.msra.mxu0 0.0
      %448 = vmatprep.subr.mxu0 0.0
      %449 = vmatpush1.msra.mxu0 0.0
      %450 = vmatprep.subr.mxu0 0.0
      %451 = vmatpush1.msra.mxu0 0.0
      %452 = vmatprep.subr.mxu0 0.0
      %453 = vmatpush1.msra.mxu0 0.0
      %454 = vmatprep.mubr.f32.mxu0 0.0
      %v455 = vand.u32 %v161, 4294901760
      %v456 = vsub.f32 %v161, %v455
      %v457 = vand.u32 %v456, 4294901760
      %458 = vmatmul.mubr.f32.gmra.mrb[0].mxu0 %v457
      %v459 = vpop.f32.mrb[0].mxu0
      %v460 = vadd.f32 %v386, %v459
      %v461 = vpop.f32.mrb[0].mxu0
      %462 = vdwg.mxu0
      %463 = vmatprep.subr.mxu0 0.0
      %v464 = vand.u32 %v110, 4294901760
      %v465 = vsub.f32 %v110, %v464
      %v466 = vand.u32 %v465, 4294901760
      %467 = vmatpush1.msra.mxu0 %v466
      %468 = vmatprep.subr.mxu0 0.0
      %469 = vmatpush1.msra.mxu0 0.0
      %470 = vmatprep.subr.mxu0 0.0
      %471 = vmatpush1.msra.mxu0 0.0
      %472 = vmatprep.subr.mxu0 0.0
      %473 = vmatpush1.msra.mxu0 0.0
      %474 = vmatprep.subr.mxu0 0.0
      %475 = vmatpush1.msra.mxu0 0.0
      %476 = vmatprep.subr.mxu0 0.0
      %477 = vmatpush1.msra.mxu0 0.0
      %478 = vmatprep.subr.mxu0 0.0
      %479 = vmatpush1.msra.mxu0 0.0
      %480 = vmatprep.subr.mxu0 0.0
      %481 = vmatpush1.msra.mxu0 0.0
      %482 = vmatprep.subr.mxu0 0.0
      %483 = vmatpush1.msra.mxu0 0.0
      %484 = vmatprep.subr.mxu0 0.0
      %485 = vmatpush1.msra.mxu0 0.0
      %486 = vmatprep.subr.mxu0 0.0
      %487 = vmatpush1.msra.mxu0 0.0
      %488 = vmatprep.subr.mxu0 0.0
      %489 = vmatpush1.msra.mxu0 0.0
      %490 = vmatprep.subr.mxu0 0.0
      %491 = vmatpush1.msra.mxu0 0.0
      %492 = vmatprep.subr.mxu0 0.0
      %493 = vmatpush1.msra.mxu0 0.0
      %494 = vmatprep.subr.mxu0 0.0
      %495 = vmatpush1.msra.mxu0 0.0
      %496 = vmatprep.subr.mxu0 0.0
      %497 = vmatpush1.msra.mxu0 0.0
      %498 = vmatprep.subr.mxu0 0.0
      %499 = vmatpush1.msra.mxu0 0.0
      %500 = vmatprep.subr.mxu0 0.0
      %501 = vmatpush1.msra.mxu0 0.0
      %502 = vmatprep.subr.mxu0 0.0
      %503 = vmatpush1.msra.mxu0 0.0
      %504 = vmatprep.subr.mxu0 0.0
      %505 = vmatpush1.msra.mxu0 0.0
      %506 = vmatprep.subr.mxu0 0.0
      %507 = vmatpush1.msra.mxu0 0.0
      %508 = vmatprep.subr.mxu0 0.0
      %509 = vmatpush1.msra.mxu0 0.0
      %510 = vmatprep.subr.mxu0 0.0
      %511 = vmatpush1.msra.mxu0 0.0
      %512 = vmatprep.subr.mxu0 0.0
      %513 = vmatpush1.msra.mxu0 0.0
      %514 = vmatprep.subr.mxu0 0.0
      %515 = vmatpush1.msra.mxu0 0.0
      %516 = vmatprep.subr.mxu0 0.0
      %517 = vmatpush1.msra.mxu0 0.0
      %518 = vmatprep.subr.mxu0 0.0
      %519 = vmatpush1.msra.mxu0 0.0
      %520 = vmatprep.subr.mxu0 0.0
      %521 = vmatpush1.msra.mxu0 0.0
      %522 = vmatprep.subr.mxu0 0.0
      %523 = vmatpush1.msra.mxu0 0.0
      %524 = vmatprep.subr.mxu0 0.0
      %525 = vmatpush1.msra.mxu0 0.0
      %526 = vmatprep.subr.mxu0 0.0
      %527 = vmatpush1.msra.mxu0 0.0
      %528 = vmatprep.subr.mxu0 0.0
      %529 = vmatpush1.msra.mxu0 0.0
      %530 = vmatprep.mubr.f32.mxu0 0.0
      %v531 = vand.u32 %v161, 4294901760
      %532 = vmatmul.mubr.f32.gmra.mrb[0].mxu0 %v531
      %v533 = vpop.f32.mrb[0].mxu0
      %v534 = vadd.f32 %v460, %v533
      %v535 = vpop.f32.mrb[0].mxu0
      %536 = vdwg.mxu0
      %537 = vmatprep.subr.mxu0 0.0
      %v538 = vand.u32 %v110, 4294901760
      %539 = vmatpush1.msra.mxu0 %v538
      %540 = vmatprep.subr.mxu0 0.0
      %541 = vmatpush1.msra.mxu0 0.0
      %542 = vmatprep.subr.mxu0 0.0
      %543 = vmatpush1.msra.mxu0 0.0
      %544 = vmatprep.subr.mxu0 0.0
      %545 = vmatpush1.msra.mxu0 0.0
      %546 = vmatprep.subr.mxu0 0.0
      %547 = vmatpush1.msra.mxu0 0.0
      %548 = vmatprep.subr.mxu0 0.0
      %549 = vmatpush1.msra.mxu0 0.0
      %550 = vmatprep.subr.mxu0 0.0
      %551 = vmatpush1.msra.mxu0 0.0
      %552 = vmatprep.subr.mxu0 0.0
      %553 = vmatpush1.msra.mxu0 0.0
      %554 = vmatprep.subr.mxu0 0.0
      %555 = vmatpush1.msra.mxu0 0.0
      %556 = vmatprep.subr.mxu0 0.0
      %557 = vmatpush1.msra.mxu0 0.0
      %558 = vmatprep.subr.mxu0 0.0
      %559 = vmatpush1.msra.mxu0 0.0
      %560 = vmatprep.subr.mxu0 0.0
      %561 = vmatpush1.msra.mxu0 0.0
      %562 = vmatprep.subr.mxu0 0.0
      %563 = vmatpush1.msra.mxu0 0.0
      %564 = vmatprep.subr.mxu0 0.0
      %565 = vmatpush1.msra.mxu0 0.0
      %566 = vmatprep.subr.mxu0 0.0
      %567 = vmatpush1.msra.mxu0 0.0
      %568 = vmatprep.subr.mxu0 0.0
      %569 = vmatpush1.msra.mxu0 0.0
      %570 = vmatprep.subr.mxu0 0.0
      %571 = vmatpush1.msra.mxu0 0.0
      %572 = vmatprep.subr.mxu0 0.0
      %573 = vmatpush1.msra.mxu0 0.0
      %574 = vmatprep.subr.mxu0 0.0
      %575 = vmatpush1.msra.mxu0 0.0
      %576 = vmatprep.subr.mxu0 0.0
      %577 = vmatpush1.msra.mxu0 0.0
      %578 = vmatprep.subr.mxu0 0.0
      %579 = vmatpush1.msra.mxu0 0.0
      %580 = vmatprep.subr.mxu0 0.0
      %581 = vmatpush1.msra.mxu0 0.0
      %582 = vmatprep.subr.mxu0 0.0
      %583 = vmatpush1.msra.mxu0 0.0
      %584 = vmatprep.subr.mxu0 0.0
      %585 = vmatpush1.msra.mxu0 0.0
      %586 = vmatprep.subr.mxu0 0.0
      %587 = vmatpush1.msra.mxu0 0.0
      %588 = vmatprep.subr.mxu0 0.0
      %589 = vmatpush1.msra.mxu0 0.0
      %590 = vmatprep.subr.mxu0 0.0
      %591 = vmatpush1.msra.mxu0 0.0
      %592 = vmatprep.subr.mxu0 0.0
      %593 = vmatpush1.msra.mxu0 0.0
      %594 = vmatprep.subr.mxu0 0.0
      %595 = vmatpush1.msra.mxu0 0.0
      %596 = vmatprep.subr.mxu0 0.0
      %597 = vmatpush1.msra.mxu0 0.0
      %598 = vmatprep.subr.mxu0 0.0
      %599 = vmatpush1.msra.mxu0 0.0
      %600 = vmatprep.subr.mxu0 0.0
      %601 = vmatpush1.msra.mxu0 0.0
      %602 = vmatprep.mubr.f32.mxu0 0.0
      %v603 = vand.u32 %v161, 4294901760
      %604 = vmatmul.mubr.f32.gmra.mrb[0].mxu0 %v603
      %v605 = vpop.f32.mrb[0].mxu0
      %v606 = vadd.f32 %v534, %v605
      %v607 = vpop.f32.mrb[0].mxu0
      %608 = vdwg.mxu0
      %609 = vst [vmem:[#allocation8] sm:$0x3f] %v606
    $region29: #{tpu_custom_call.1} parent=1 // pred_fallthru
      _
    // Predicated region
    $region30: #{tpu_custom_call.1} parent=1 // pred_check
      _
    $region31: #{tpu_custom_call.1} parent=1 // pred_check_branch
      %611 = sbr.rel (0) target = $region33
    $region32: #{tpu_custom_call.1} parent=1 // pred_region
      %s613 = ssub.s32 128, 128
      %614 = vsyncadd [#allocation5], %s613
      %s616 = sshll.u32 [#allocation8], 4
      %s617 = int_to_ptr.vmem [resolvable:$true] %s616
      %619 = dma.vmem_to_hbm [thread:$0]  %s617, 128, %s3, [#allocation5]
    $region33: #{tpu_custom_call.1} parent=1 // pred_fallthru
      _
    // Predicated region
    $region34: #{tpu_custom_call.1} parent=1 // pred_check
      _
    $region35: #{tpu_custom_call.1} parent=1 // pred_check_branch
      %621 = sbr.rel (0) target = $region37
    $region36: #{tpu_custom_call.1} parent=1 // pred_region
      %622 = dma.done [#allocation5], 128
    $region37: #{tpu_custom_call.1} parent=1 // pred_fallthru
      _
    %623 = vsyncpa [#allocation4], 1
    %624 = vsyncpa [#allocation7], 1
    %625 = vsyncpa [#allocation5], 1

</llo_original>
